<compile_context>
chip_gen: v5e
topology: v5e:2x2
jax: 0.10.0
libtpu: 0.0.40
codegen_flags: <defaults>
</compile_context>

<pallas_src>
import functools

import jax
import jax.numpy as jnp
from jax import lax
from jax.experimental import pallas as pl
from jax.experimental.pallas import tpu as pltpu


def _focal_loss_kernel(logits_ref, tgt_ref, loss_ref, *, gamma):
    """Per-row focal loss for one row tile. No state carried across grid steps."""
    x = logits_ref[...].astype(jnp.float32)               # (TN, C)
    tgt = tgt_ref[...]                                     # (TN, 1) int32

    # Numerically stable softmax pieces; the single exp over the tile is reused.
    m = jnp.max(x, axis=-1, keepdims=True)                 # (TN, 1)
    shift = x - m                                          # (TN, C)
    e = jnp.exp(shift)                                     # (TN, C)
    sum_e = jnp.sum(e, axis=-1, keepdims=True)             # (TN, 1)

    # Gather shifted target logit via one-hot (no dynamic gather on TPU).
    col = lax.broadcasted_iota(jnp.int32, x.shape, 1)      # (TN, C)
    tgt_shift = jnp.sum(jnp.where(col == tgt, shift, 0.0),
                        axis=-1, keepdims=True)            # (TN, 1) = x_t - m

    ce = jnp.log(sum_e) - tgt_shift                        # per-row cross entropy
    # pt = softmax(x)[target] = exp(x_t - m) / sum_e  (avoids exp(-ce) round trip)
    pt = jnp.exp(tgt_shift) * pl.reciprocal(sum_e, approx=False)

    one_minus_pt = jnp.maximum(1.0 - pt, 0.0)              # clamp: no power-of-negative NaN
    g = float(gamma)
    if g == round(g):                                      # gamma=2.0 default -> VPU mults only
        w = lax.integer_pow(one_minus_pt, int(round(g)))
    else:
        w = jnp.power(one_minus_pt, g)

    loss_ref[...] = w * ce                                 # (TN, 1)


def _vmem_capacity_bytes():
    try:
        info = pltpu.get_tpu_info()
        cap = int(getattr(info, "vmem_capacity_bytes", 0))
        if cap > 0:
            return cap
    except Exception:
        pass
    return 64 << 20  # conservative (v7x) fallback; also safe on v5e/v6e


def focal_loss(logits, targets, gamma=2.0, *, tile_n=None):
    """Pallas implementation of FocalLoss.forward (weight=None).

    logits:  (N, C) float array
    targets: (N,)   int array of class indices
    returns: scalar float32 (mean focal loss)
    """
    n, c = logits.shape
    vmem_cap = _vmem_capacity_bytes()

    if tile_n is None:
        # Biggest row tile whose double-buffered logits fit ~40% of VMEM.
        budget = int(vmem_cap * 0.4)
        tile_n = budget // (2 * c * 4)
        tile_n = max(8, min(tile_n, 2048))
        tile_n = min(tile_n, ((n + 7) // 8) * 8)   # don't tile past the data
        tile_n = max(8, (tile_n // 8) * 8)

    # Pad rows so the grid divides exactly; padded rows produce finite garbage
    # that is sliced off before the mean (true N is used for the mean).
    n_pad = ((n + tile_n - 1) // tile_n) * tile_n
    logits_f32 = logits.astype(jnp.float32)
    tgt2d = targets.astype(jnp.int32).reshape(n, 1)
    if n_pad != n:
        logits_f32 = jnp.pad(logits_f32, ((0, n_pad - n), (0, 0)))
        tgt2d = jnp.pad(tgt2d, ((0, n_pad - n), (0, 0)))

    # Scoped VMEM limit sized to the chosen tiles (double-buffered in/out) + slack.
    vmem_needed = 2 * (tile_n * c * 4 + 2 * tile_n * 4) + (8 << 20)
    vmem_limit = int(min(max(vmem_needed, 16 << 20), vmem_cap - (4 << 20)))

    kernel = functools.partial(_focal_loss_kernel, gamma=float(gamma))

    per_row = pl.pallas_call(
        kernel,
        out_shape=jax.ShapeDtypeStruct((n_pad, 1), jnp.float32),
        grid_spec=pltpu.PrefetchScalarGridSpec(
            num_scalar_prefetch=0,
            grid=(n_pad // tile_n,),
            in_specs=[
                pl.BlockSpec((tile_n, c), lambda i: (i, 0)),
                pl.BlockSpec((tile_n, 1), lambda i: (i, 0)),
            ],
            out_specs=pl.BlockSpec((tile_n, 1), lambda i: (i, 0)),
        ),
        compiler_params=pltpu.CompilerParams(
            # No cross-step carry -> fully parallel grid (megacore sharding on v7x).
            dimension_semantics=("parallel",),
            vmem_limit_bytes=vmem_limit,
        ),
    )(logits_f32, tgt2d)

    # Tiny epilogue reduction in JAX (N*4 bytes HBM): exact, tree-reduced mean.
    return jnp.mean(per_row[:n, 0])


def _focal_loss_ref(logits, targets, gamma=2.0):
    logp = jax.nn.log_softmax(logits.astype(jnp.float32), axis=-1)
    ce = -jnp.take_along_axis(logp, targets[:, None], axis=-1)[:, 0]
    pt = jnp.exp(-ce)
    return jnp.mean((1.0 - pt) ** gamma * ce)


if __name__ == "__main__":
    key = jax.random.PRNGKey(0)
    k1, k2, k3, k4 = jax.random.split(key, 4)

    # Small shapes consistent with (N, C) logits / (N,) targets.
    N, C = 16, 32
    logits = jax.random.normal(k1, (N, C), dtype=jnp.float32)
    targets = jax.random.randint(k2, (N,), 0, C, dtype=jnp.int32)

    # TODO(synk): per-class `weight` argument of CrossEntropyLoss not implemented
    # (module default is weight=None); gamma defaults to 2.0 as in __init__.
    out = focal_loss(logits, targets, gamma=2.0)
    out = jax.block_until_ready(out)
    ref = _focal_loss_ref(logits, targets, gamma=2.0)
    assert jnp.allclose(out, ref, rtol=1e-5, atol=1e-5), (out, ref)

    # Also exercise the padding path (N not a multiple of the row tile).
    N2 = 13
    logits2 = jax.random.normal(k3, (N2, C), dtype=jnp.float32)
    targets2 = jax.random.randint(k4, (N2,), 0, C, dtype=jnp.int32)
    out2 = jax.block_until_ready(focal_loss(logits2, targets2, gamma=2.0))
    ref2 = _focal_loss_ref(logits2, targets2, gamma=2.0)
    assert jnp.allclose(out2, ref2, rtol=1e-5, atol=1e-5), (out2, ref2)

    print("KERNEL_OK")
</pallas_src>

<mosaic_0001>
module attributes {stable_mosaic.version = 11 : i64} {
  func.func @_focal_loss_kernel(%arg0: i32, %arg1: memref<16x32xf32, #tpu.memory_space<vmem>>, %arg2: memref<16x1xi32, #tpu.memory_space<vmem>>, %arg3: memref<16x1xf32, #tpu.memory_space<vmem>>) attributes {dimension_semantics = [#tpu.dimension_semantics<parallel>], iteration_bounds = array<i64: 1>, scalar_prefetch = 0 : i64, scratch_operands = 0 : i64, tpu.core_type = #tpu.core_type<tc>, window_params = [{transform_indices = @transform_0, window_bounds = array<i64: 16, 32>}, {transform_indices = @transform_1, window_bounds = array<i64: 16, 1>}, {transform_indices = @transform_2, window_bounds = array<i64: 16, 1>}]} {
    %c0 = arith.constant 0 : index
    %c0_0 = arith.constant 0 : index
    %0 = vector.load %arg1[%c0, %c0_0] : memref<16x32xf32, #tpu.memory_space<vmem>>, vector<16x32xf32>
    %c0_1 = arith.constant 0 : index
    %c0_2 = arith.constant 0 : index
    %1 = vector.load %arg2[%c0_1, %c0_2] : memref<16x1xi32, #tpu.memory_space<vmem>>, vector<16x1xi32>
    %cst = arith.constant dense<0xFF800000> : vector<16xf32>
    %2 = vector.multi_reduction <maximumf>, %0, %cst [1] : vector<16x32xf32> to vector<16xf32>
    %3 = vector.shape_cast %2 : vector<16xf32> to vector<16x1xf32>
    %4 = vector.broadcast %3 : vector<16x1xf32> to vector<16x32xf32>
    %5 = arith.subf %0, %4 : vector<16x32xf32>
    %6 = math.exp %5 : vector<16x32xf32>
    %cst_3 = arith.constant dense<0.000000e+00> : vector<16xf32>
    %7 = vector.multi_reduction <add>, %6, %cst_3 [1] : vector<16x32xf32> to vector<16xf32>
    %8 = vector.shape_cast %7 : vector<16xf32> to vector<16x1xf32>
    %9 = tpu.iota {dimensions = array<i32: 1>} : vector<16x32xi32>
    %10 = vector.broadcast %1 : vector<16x1xi32> to vector<16x32xi32>
    %11 = arith.cmpi eq, %9, %10 : vector<16x32xi32>
    %cst_4 = arith.constant 0.000000e+00 : f32
    %12 = vector.broadcast %cst_4 : f32 to vector<16x32xf32>
    %13 = arith.select %11, %5, %12 : vector<16x32xi1>, vector<16x32xf32>
    %cst_5 = arith.constant dense<0.000000e+00> : vector<16xf32>
    %14 = vector.multi_reduction <add>, %13, %cst_5 [1] : vector<16x32xf32> to vector<16xf32>
    %15 = vector.shape_cast %14 : vector<16xf32> to vector<16x1xf32>
    %16 = math.log %8 : vector<16x1xf32>
    %17 = arith.subf %16, %15 : vector<16x1xf32>
    %18 = math.exp %15 : vector<16x1xf32>
    %19 = tpu.reciprocal %8 : vector<16x1xf32> -> vector<16x1xf32>
    %20 = arith.mulf %18, %19 : vector<16x1xf32>
    %cst_6 = arith.constant 1.000000e+00 : f32
    %21 = vector.broadcast %cst_6 : f32 to vector<16x1xf32>
    %22 = arith.subf %21, %20 : vector<16x1xf32>
    %cst_7 = arith.constant 0.000000e+00 : f32
    %23 = vector.broadcast %cst_7 : f32 to vector<16x1xf32>
    %24 = arith.maximumf %22, %23 : vector<16x1xf32>
    %25 = arith.mulf %24, %24 : vector<16x1xf32>
    %26 = arith.mulf %25, %17 : vector<16x1xf32>
    %c0_8 = arith.constant 0 : index
    %c0_9 = arith.constant 0 : index
    %27 = vector.load %arg3[%c0_8, %c0_9] : memref<16x1xf32, #tpu.memory_space<vmem>>, vector<16x1xf32>
    tpu.vector_store %arg3[%c0_8, %c0_9], %26 {strides = array<i32>} : memref<16x1xf32, #tpu.memory_space<vmem>>, vector<16x1xf32>,
    return
  }
  func.func @transform_0(%arg0: i32) -> (i32, i32) {
    %c0_i32 = arith.constant 0 : i32
    %c0_i32_0 = arith.constant 0 : i32
    return %arg0, %c0_i32 : i32, i32
  }
  func.func @transform_1(%arg0: i32) -> (i32, i32) {
    %c0_i32 = arith.constant 0 : i32
    %c0_i32_0 = arith.constant 0 : i32
    return %arg0, %c0_i32 : i32, i32
  }
  func.func @transform_2(%arg0: i32) -> (i32, i32) {
    %c0_i32 = arith.constant 0 : i32
    %c0_i32_0 = arith.constant 0 : i32
    return %arg0, %c0_i32 : i32, i32
  }
}

</mosaic_0001>

<llo_original>
// kernel: tpu_custom_call.1
$region0: #{tpu_custom_call.1}
  #allocation0 [shape = 'u32[]', space=smem, size = 0x4, offset = 0x4, fixed_abs, tag = 'smem constant byte address 0x4 - core index']
  #allocation1 [shape = 'u32[72,128]{1,0:T(1,128)}', space=vmem, size = 0x9000, scoped, tag = 'internal scratch']
  %s0 = inlined_call_operand.vmem [shape: f32[16,32], index: 0, kind: input, shape index: {}]
  %s1 = inlined_call_operand.vmem [shape: s32[16,1], index: 1, kind: input, shape index: {}]
  %s2 = inlined_call_operand.vmem [shape: f32[16,1], index: 2, kind: output, shape index: {}]
  %s3 = sld [smem:[#allocation0]]
  $region18: #{tpu_custom_call.1} parent=0
    _
  %s5 = ssub.s32 1, %s3
  %s6 = scalar_select 0, %s5, %s3
  // Predicated region
  $region2: #{tpu_custom_call.1} parent=0 // pred_check
    _
  $region3: #{tpu_custom_call.1} parent=0 // pred_check_branch
    %8 = sbr.rel (0) target = $region5
  $region4: #{tpu_custom_call.1} parent=0 // pred_region
    _
  $region5: #{tpu_custom_call.1} parent=0 // pred_fallthru
    _
  // Predicated region
  $region6: #{tpu_custom_call.1} parent=0 // pred_check
    _
  $region7: #{tpu_custom_call.1} parent=0 // pred_check_branch
    %10 = sbr.rel (0) target = $region9
  $region8: #{tpu_custom_call.1} parent=0 // pred_region
    _
  $region9: #{tpu_custom_call.1} parent=0 // pred_fallthru
    _
  %v11 = vld [vmem:[%s0] sm:$0xff]
  %v12 = vld [vmem:[%s0 + $0x8] sm:$0xff]
  %v13 = vld [vmem:[%s1] sm:$0xff]
  %v14 = vld [vmem:[%s1 + $0x8] sm:$0xff]
  %vm15 = vcmask 261120
  %v16 = vsel %vm15, %v11, -inf
  %17 = vmax.xlane.f32.xlu0 %v16
  %v18 = vpop.xlane.xlu0 %17
  %v19 = vsel %vm15, %v12, -inf
  %20 = vmax.xlane.f32.xlu0 %v19
  %v21 = vpop.xlane.xlu0 %20
  %v22 = vsub.f32 %v11, %v18
  %v23 = vsub.f32 %v12, %v21
  %v24 = vmul.f32 %v22, 1.442695
  %v25 = vpow.pop %v24
  %v26 = vmul.f32 %v23, 1.442695
  %v27 = vpow.pop %v26
  %v28 = vsel %vm15, %v25, 0.0
  %29 = vadd.xlane.f32.xlu0 %v28
  %v30 = vpop.xlane.xlu0 %29
  %v31 = vsel %vm15, %v27, 0.0
  %32 = vadd.xlane.f32.xlu0 %v31
  %v33 = vpop.xlane.xlu0 %32
  %v34 = vlaneseq
  %v35 = vand.u32 %v34, 127
  %36 = vset.pattern.permute.xlu0 0
  %37 = vperm.xlu0 %36, %v13
  %v38 = vpop.permute.xlu0 %37
  %39 = vset.pattern.permute.xlu0 0
  %40 = vperm.xlu0 %39, %v14
  %v41 = vpop.permute.xlu0 %40
  %vm42 = vcmp.eq.s32.totalorder %v35, %v38
  %vm43 = vcmp.eq.s32.totalorder %v35, %v41
  %v44 = vsel %vm42, %v22, 0.0
  %v45 = vsel %vm43, %v23, 0.0
  %v46 = vsel %vm15, %v44, 0.0
  %47 = vadd.xlane.f32.xlu0 %v46
  %v48 = vpop.xlane.xlu0 %47
  %v49 = vsel %vm15, %v45, 0.0
  %50 = vadd.xlane.f32.xlu0 %v49
  %v51 = vpop.xlane.xlu0 %50
  %v52 = vlog2.pop %v30
  %v53 = vmul.f32 %v52, 0.6931472
  %v54 = vlog2.pop %v33
  %v55 = vmul.f32 %v54, 0.6931472
  %v56 = vsub.f32 %v53, %v48
  %v57 = vsub.f32 %v55, %v51
  %v58 = vmul.f32 %v48, 1.442695
  %v59 = vpow.pop %v58
  %v60 = vmul.f32 %v51, 1.442695
  %v61 = vpow.pop %v60
  %v62 = vrcp.pop %v30
  %v63 = vmul.f32 %v30, %v62
  %v64 = vsub.f32 1.0, %v63
  %v65 = vmul.f32 %v62, %v64
  %v66 = vadd.f32 %v62, %v65
  %vm67 = vweird.f32 %v30
  %vm68 = vweird.f32 %v62
  %vm69 = vmor %vm67, %vm68
  %v70 = vsel %vm69, %v62, %v66
  %v71 = vand.u32 2147483647, %v30
  %vm72 = vcmp.eq.f32.partialorder %v71, 8.507059e+37
  %v73 = vand.u32 %v30, 2147483648
  %v74 = vor.u32 1.1754944e-38, %v73
  %v75 = vsel %vm72, %v74, %v70
  %v76 = vrcp.pop %v33
  %v77 = vmul.f32 %v33, %v76
  %v78 = vsub.f32 1.0, %v77
  %v79 = vmul.f32 %v76, %v78
  %v80 = vadd.f32 %v76, %v79
  %vm81 = vweird.f32 %v33
  %vm82 = vweird.f32 %v76
  %vm83 = vmor %vm81, %vm82
  %v84 = vsel %vm83, %v76, %v80
  %v85 = vand.u32 2147483647, %v33
  %vm86 = vcmp.eq.f32.partialorder %v85, 8.507059e+37
  %v87 = vand.u32 %v33, 2147483648
  %v88 = vor.u32 1.1754944e-38, %v87
  %v89 = vsel %vm86, %v88, %v84
  %v90 = vmul.f32 %v59, %v75
  %v91 = vmul.f32 %v61, %v89
  %v92 = vsub.f32 1.0, %v90
  %v93 = vsub.f32 1.0, %v91
  %v94 = vmax.f32 %v92, 0.0
  %v95 = vmax.f32 %v93, 0.0
  %v96 = vmul.f32 %v94, %v94
  %v97 = vmul.f32 %v95, %v95
  %v98 = vmul.f32 %v96, %v56
  %v99 = vmul.f32 %v97, %v57
  %vm100 = vcmask 7168
  %101 = vst.msk [vmem:[%s2] sm:$0xff] %vm100, %v98
  %102 = vst.msk [vmem:[%s2 + $0x8] sm:$0xff] %vm100, %v99
  // Predicated region
  $region10: #{tpu_custom_call.1} parent=0 // pred_check
    _
  $region11: #{tpu_custom_call.1} parent=0 // pred_check_branch
    %104 = sbr.rel (0) target = $region13
  $region12: #{tpu_custom_call.1} parent=0 // pred_region
    _
  $region13: #{tpu_custom_call.1} parent=0 // pred_fallthru
    _
  // Predicated region
  $region14: #{tpu_custom_call.1} parent=0 // pred_check
    _
  $region15: #{tpu_custom_call.1} parent=0 // pred_check_branch
    %106 = sbr.rel (0) target = $region17
  $region16: #{tpu_custom_call.1} parent=0 // pred_region
    _
  $region17: #{tpu_custom_call.1} parent=0 // pred_fallthru
    _

</llo_original>
